<compile_context>
chip_gen: v7x
topology: tpu7x:2x2x1
jax: 0.10.0
libtpu: 0.0.40
codegen_flags: <defaults>
</compile_context>

<pallas_src>
import jax
import jax.numpy as jnp
from jax.experimental import pallas as pl
from jax.experimental.pallas import tpu as pltpu

_LANES = 128       # vreg lane width
_SUBLANES = 8      # f32 sublane quantum
_TILE_ROWS = 2048  # rows per grid step: 2048*128*4B = 1 MiB per block


def _param_act_kernel(p_ref, o_ref):
    # ParamAct with activation=None -> identity on the parameter tile.
    # (A real activation, if configured, would be applied elementwise here.)
    o_ref[...] = p_ref[...]


def prior_predictor_forward(shape_prior_param: jax.Array) -> jax.Array:
    """Pallas implementation of PriorPredictor.forward().

    shape_prior_param: (num_verts_base, 3) parameter of the ParamAct module.
    Returns the shape prior of shape (num_verts_base, 3) (identical values,
    since activation=None).
    """
    V, C = shape_prior_param.shape
    dtype = shape_prior_param.dtype
    n = V * C

    # Lane-dense layout: flatten and pad to a (rows, 128) slab, rows a multiple
    # of the sublane quantum and (when tiled) of the tile size.
    rows = max(_SUBLANES, pl.cdiv(n, _LANES))
    rows = ((rows + _SUBLANES - 1) // _SUBLANES) * _SUBLANES
    if rows > _TILE_ROWS:
        tile_rows = _TILE_ROWS
        rows = ((rows + _TILE_ROWS - 1) // _TILE_ROWS) * _TILE_ROWS
    else:
        tile_rows = rows

    padded = rows * _LANES
    flat = shape_prior_param.reshape(-1)
    if padded != n:
        flat = jnp.pad(flat, (0, padded - n))
    slab = flat.reshape(rows, _LANES)

    out_slab = pl.pallas_call(
        _param_act_kernel,
        out_shape=jax.ShapeDtypeStruct((rows, _LANES), dtype),
        grid=(rows // tile_rows,),
        in_specs=[pl.BlockSpec((tile_rows, _LANES), lambda i: (i, 0))],
        out_specs=pl.BlockSpec((tile_rows, _LANES), lambda i: (i, 0)),
        # The padded slab is a throwaway intermediate: donate it so the output
        # reuses its HBM buffer instead of allocating a second one.
        input_output_aliases={0: 0},
        compiler_params=pltpu.CompilerParams(
            dimension_semantics=("parallel",),
        ),
    )(slab)

    return out_slab.reshape(-1)[:n].reshape(V, C)


def init_prior_predictor_params(key, num_verts_base: int) -> jax.Array:
    """Deterministic synthetic init of the ParamAct parameter (num_verts_base, 3)."""
    return 0.01 * jax.random.normal(key, (num_verts_base, 3), dtype=jnp.float32)


if __name__ == "__main__":
    num_verts_base = 64  # small synthetic mesh

    key = jax.random.PRNGKey(0)
    shape_prior_param = init_prior_predictor_params(key, num_verts_base)

    forward = jax.jit(prior_predictor_forward)
    out = jax.block_until_ready(forward(shape_prior_param))

    # Correctness check against the reference semantics (identity on the parameter).
    assert out.shape == (num_verts_base, 3)
    assert out.dtype == jnp.float32
    assert jnp.allclose(out, shape_prior_param)

    print("KERNEL_OK")
</pallas_src>

<mosaic_0001>
module attributes {stable_mosaic.version = 11 : i64} {
  func.func @_param_act_kernel(%arg0: i32, %arg1: memref<8x128xf32, #tpu.memory_space<vmem>>, %arg2: memref<8x128xf32, #tpu.memory_space<vmem>>) attributes {dimension_semantics = [#tpu.dimension_semantics<parallel>], iteration_bounds = array<i64: 1>, scalar_prefetch = 0 : i64, scratch_operands = 0 : i64, tpu.core_type = #tpu.core_type<tc>, window_params = [{transform_indices = @transform_0, window_bounds = array<i64: 8, 128>}, {transform_indices = @transform_1, window_bounds = array<i64: 8, 128>}]} {
    %c0 = arith.constant 0 : index
    %c0_0 = arith.constant 0 : index
    %0 = vector.load %arg1[%c0, %c0_0] : memref<8x128xf32, #tpu.memory_space<vmem>>, vector<8x128xf32>
    %c0_1 = arith.constant 0 : index
    %c0_2 = arith.constant 0 : index
    %1 = vector.load %arg2[%c0_1, %c0_2] : memref<8x128xf32, #tpu.memory_space<vmem>>, vector<8x128xf32>
    tpu.vector_store %arg2[%c0_1, %c0_2], %0 {strides = array<i32>} : memref<8x128xf32, #tpu.memory_space<vmem>>, vector<8x128xf32>,
    return
  }
  func.func @transform_0(%arg0: i32) -> (i32, i32) {
    %c0_i32 = arith.constant 0 : i32
    %c0_i32_0 = arith.constant 0 : i32
    return %arg0, %c0_i32 : i32, i32
  }
  func.func @transform_1(%arg0: i32) -> (i32, i32) {
    %c0_i32 = arith.constant 0 : i32
    %c0_i32_0 = arith.constant 0 : i32
    return %arg0, %c0_i32 : i32, i32
  }
}

</mosaic_0001>

<llo_original>
// kernel: prior_predictor_forward.1
$region0: #{prior_predictor_forward.1}
  #allocation0 [shape = 'u32[]', space=smem, size = 0x4, offset = 0x4, fixed_abs, tag = 'smem constant byte address 0x4 - core index']
  #allocation1 [shape = 'u32[144,128]{1,0:T(1,128)}', space=vmem, size = 0x12000, scoped, tag = 'internal scratch']
  %s0 = inlined_call_operand.vmem [shape: f32[8,128], index: 0, kind: input, shape index: {}, may-alias: {0,1}]
  %s1 = inlined_call_operand.vmem [shape: f32[8,128], index: 1, kind: output, shape index: {}, may-alias: {0,1}]
  %s2 = sld [smem:[#allocation0]]
  $region14: #{prior_predictor_forward.1} parent=0
    _
  %s4 = ssub.s32 1, %s2
  %s5 = scalar_select 0, %s4, %s2
  // Predicated region
  $region2: #{prior_predictor_forward.1} parent=0 // pred_check
    _
  $region3: #{prior_predictor_forward.1} parent=0 // pred_check_branch
    %7 = sbr.rel (0) target = $region5
  $region4: #{prior_predictor_forward.1} parent=0 // pred_region
    _
  $region5: #{prior_predictor_forward.1} parent=0 // pred_fallthru
    _
  %v8 = vld [vmem:[%s0] sm:$0xff]
  %9 = vst [vmem:[%s1] sm:$0xff] %v8
  // Predicated region
  $region6: #{prior_predictor_forward.1} parent=0 // pred_check
    _
  $region7: #{prior_predictor_forward.1} parent=0 // pred_check_branch
    %11 = sbr.rel (0) target = $region9
  $region8: #{prior_predictor_forward.1} parent=0 // pred_region
    _
  $region9: #{prior_predictor_forward.1} parent=0 // pred_fallthru
    _
  // Predicated region
  $region10: #{prior_predictor_forward.1} parent=0 // pred_check
    _
  $region11: #{prior_predictor_forward.1} parent=0 // pred_check_branch
    %13 = sbr.rel (0) target = $region13
  $region12: #{prior_predictor_forward.1} parent=0 // pred_region
    _
  $region13: #{prior_predictor_forward.1} parent=0 // pred_fallthru
    _

</llo_original>
